<compile_context>
chip_gen: v7x
topology: tpu7x:2x2x1
jax: 0.10.0
libtpu: 0.0.40
codegen_flags: <defaults>
</compile_context>

<pallas_src>
import functools

import jax
import jax.numpy as jnp
from jax import lax
from jax.experimental import pallas as pl
from jax.experimental.pallas import tpu as pltpu


def _round_up(x, m):
    return (x + m - 1) // m * m


def _vmem_capacity_bytes():
    """Physical VMEM per TensorCore; conservative fallback if the query fails."""
    try:
        cap = getattr(pltpu.get_tpu_info(), "vmem_capacity_bytes", None)
        if cap:
            return int(cap)
    except Exception:
        pass
    return 64 * 1024 * 1024  # v7x per-TC size — safe lower bound across chips


def _pick_tm(batch):
    """Padding-aware TM choice (multiples of 8).  Among near-ties (<= 12.5%
    extra padding) prefer the larger tile: fewer M tiles -> the weight is
    re-streamed from HBM fewer times."""
    candidates = (512, 256, 128, 64, 32, 16, 8)
    min_padded = min(_round_up(max(batch, 1), c) for c in candidates)
    for c in candidates:  # descending
        if _round_up(max(batch, 1), c) <= min_padded + (min_padded // 8):
            return c
    return 8


def fc_layer_kernel(x_ref, w_ref, b_ref, o_ref, xn_ref):
    # x_ref : (TM, Kp)  f32   activations (zero-padded K: zeros keep norm/dot exact)
    # w_ref : (Kp, TN)  bf16  weight, pre-transposed to (K, N) once in prepare
    # b_ref : (1,  TN)  f32   bias tile (re-fetched per N step; negligible bytes)
    # o_ref : (TM, TN)  f32
    # xn_ref: (TM, Kp)  bf16  VMEM scratch — normalized x, cached across the N sweep

    # Row-wise L2 normalization, computed once per M tile (j == 0), in f32:
    # rsqrt (EUP slot) * x instead of sqrt + full-width VALU divide.
    # All-zero (padded) rows produce NaN here, matching torch.div(x, 0)
    # semantics; padded output rows are sliced off in the wrapper.
    @pl.when(pl.program_id(1) == 0)
    def _():
        x = x_ref[...]
        inv_norm = lax.rsqrt(jnp.sum(x * x, axis=1, keepdims=True))
        xn_ref[...] = (x * inv_norm).astype(xn_ref.dtype)

    # (TM, K) @ (K, TN) on the MXU in bf16, f32 accumulation.
    y = jnp.dot(xn_ref[...], w_ref[...], preferred_element_type=jnp.float32)
    y = y + b_ref[...]
    o_ref[...] = jnp.maximum(y, 0.0).astype(o_ref.dtype)


def prepare_fc_params(w, b, *, matmul_dtype=jnp.bfloat16):
    """One-time weight/bias preparation (keep OUT of the per-call hot path).

    w: (out_ch, in_ch) PyTorch nn.Linear layout.  b: (out_ch,).
    Returns (wt, bp, out_ch):
      wt: (Kp, Np) weight transposed to a natural (K, N) MXU RHS, zero-padded
          to 128 multiples, cast to `matmul_dtype` (bf16 -> full-rate MXU and
          half the weight HBM traffic).
      bp: (1, Np) f32 bias, zero-padded.
    """
    out_ch, in_ch = w.shape
    kp = _round_up(in_ch, 128)
    np_ = _round_up(out_ch, 128)
    wt = jnp.asarray(w, jnp.float32).T                       # (in_ch, out_ch)
    if (kp, np_) != (in_ch, out_ch):
        wt = jnp.pad(wt, ((0, kp - in_ch), (0, np_ - out_ch)))
    wt = wt.astype(matmul_dtype)
    bp = jnp.asarray(b, jnp.float32)
    if np_ != out_ch:
        bp = jnp.pad(bp, (0, np_ - out_ch))
    return wt, bp.reshape(1, np_), out_ch


@functools.partial(jax.jit, static_argnames=("out_ch",))
def fc_layer_forward(x, wt, bp, *, out_ch):
    """Pallas path.  x: (B, in_ch) f32; (wt, bp) from prepare_fc_params."""
    B, in_ch = x.shape
    Kp, Np = wt.shape
    wbytes = jnp.dtype(wt.dtype).itemsize

    # --- padding-aware tiles (all 8-sublane / 128-lane aligned) ---
    TM = _pick_tm(B)
    TN = 256 if Np % 256 == 0 else 128   # 256 targets the v6e/v7x MXU; Np is a 128-multiple

    # --- chip-aware VMEM budget from the actual buffers ---
    budget = int(0.85 * _vmem_capacity_bytes())

    def vmem_need(tm, tn):
        return (2 * tm * Kp * 4          # x tile (f32), double-buffered
                + 2 * Kp * tn * wbytes   # weight tile, double-buffered
                + 2 * tn * 4             # bias tile, double-buffered
                + 2 * tm * tn * 4        # output tile (f32), double-buffered
                + tm * Kp * wbytes)      # cached normalized-x scratch

    while vmem_need(TM, TN) > budget and TM > 8:
        TM = max(8, TM // 2)
    while vmem_need(TM, TN) > budget and TN > 128:
        TN //= 2

    if vmem_need(TM, TN) > budget:
        # TODO(synk): K-tiled Pallas variant for in_ch too large for v7x's
        # 64 MiB VMEM (grid K axis + f32 accumulator + precomputed inv_norm);
        # until then fall back to XLA's fused dot for those shapes.
        inv_norm = lax.rsqrt(jnp.sum(x * x, axis=1, keepdims=True))
        y = jnp.dot((x * inv_norm).astype(wt.dtype), wt[:in_ch, :],
                    preferred_element_type=jnp.float32) + bp
        return jnp.maximum(y, 0.0)[:, :out_ch].astype(x.dtype)

    Bp = _round_up(B, TM)
    # Only the (small) activation is padded per call; weight/bias were prepped once.
    # Zero-padding K is load-bearing: zeros leave the L2 norm and the dot exact.
    if (Bp, Kp) != (B, in_ch):
        xp = jnp.pad(x, ((0, Bp - B), (0, Kp - in_ch)))
    else:
        xp = x

    grid = (Bp // TM, Np // TN)
    n_m_tiles = grid[0]

    cost = pl.CostEstimate(
        flops=2 * Bp * Kp * Np,
        transcendentals=Bp,  # one rsqrt per row (norm cached across the N sweep)
        bytes_accessed=(Bp * Kp * 4                        # x read
                        + n_m_tiles * Np * Kp * wbytes     # weight re-streamed per M tile
                        + n_m_tiles * Np * 4               # bias
                        + Bp * Np * 4),                    # output write
    )

    out = pl.pallas_call(
        fc_layer_kernel,
        out_shape=jax.ShapeDtypeStruct((Bp, Np), x.dtype),
        grid_spec=pltpu.PrefetchScalarGridSpec(
            num_scalar_prefetch=0,
            grid=grid,
            in_specs=[
                # x tile: block index depends only on i -> stays resident (no
                # re-DMA) while j sweeps the N tiles.
                pl.BlockSpec((TM, Kp), lambda i, j: (i, 0)),
                # weight tile: natural (K, N) RHS, streamed along j.
                pl.BlockSpec((Kp, TN), lambda i, j: (0, j)),
                # bias tile: re-fetched each j step; bytes are negligible.
                pl.BlockSpec((1, TN), lambda i, j: (0, j)),
            ],
            out_specs=pl.BlockSpec((TM, TN), lambda i, j: (i, j)),
            scratch_shapes=[pltpu.VMEM((TM, Kp), wt.dtype)],
        ),
        compiler_params=pltpu.CompilerParams(
            # M is megacore-sharded; N must be "arbitrary" because the cached
            # x_n scratch is written at j == 0 and reused for j > 0.
            dimension_semantics=("parallel", "arbitrary"),
            vmem_limit_bytes=int(min(budget,
                                     max(32 * 1024 * 1024,
                                         2 * vmem_need(TM, TN)))),
        ),
        cost_estimate=cost,
    )(xp, wt, bp)

    return out[:B, :out_ch]


def fc_layer_reference(x, w, b):
    """Pure-JAX reference (PyTorch-faithful: sqrt norm + divide, f32 matmul)."""
    norm = jnp.sqrt(jnp.sum(x * x, axis=1, keepdims=True))
    x_n = x / norm
    return jnp.maximum(x_n @ w.T + b, 0.0)


def fc_layer(x, w, b, *, min_pallas_work=128 * 128):
    """Convenience wrapper taking raw PyTorch-layout params.  Prefer the
    prepare-once + forward-many flow for repeated calls; this re-prepares the
    weight per call.  Tiny problems go straight to XLA (kernel overhead)."""
    if x.shape[0] * w.shape[0] < min_pallas_work:
        return fc_layer_reference(x, w, b)
    wt, bp, out_ch = prepare_fc_params(w, b)
    return fc_layer_forward(x, wt, bp, out_ch=out_ch)


if __name__ == "__main__":
    # Small shapes consistent with fc_layer: batch=8, in_ch=32, out_ch=64
    B, in_ch, out_ch = 8, 32, 64

    key = jax.random.PRNGKey(0)
    kx, kw, kb = jax.random.split(key, 3)

    x = jax.random.normal(kx, (B, in_ch), dtype=jnp.float32)
    # PyTorch Linear parameter layout: weight (out_ch, in_ch), bias (out_ch,)
    bound = 1.0 / (in_ch ** 0.5)
    w = jax.random.uniform(kw, (out_ch, in_ch), minval=-bound, maxval=bound,
                           dtype=jnp.float32)
    b = jax.random.uniform(kb, (out_ch,), minval=-bound, maxval=bound,
                           dtype=jnp.float32)

    # One-time weight prep (transpose + pad + bf16 cast), then the Pallas path.
    # (The size-gated `fc_layer` would route this tiny shape to plain JAX in
    #  production; we exercise the kernel directly here.)
    wt, bp, oc = prepare_fc_params(w, b)
    out = fc_layer_forward(x, wt, bp, out_ch=oc)
    out = jax.block_until_ready(out)

    ref = fc_layer_reference(x, w, b)
    assert out.shape == (B, out_ch)
    # bf16 MXU path (f32 accumulation): tolerance loosened vs the f32 reference.
    assert jnp.allclose(out, ref, atol=2e-2, rtol=2e-2), "mismatch vs reference"

    print("KERNEL_OK")
</pallas_src>

<mosaic_0001>
module attributes {stable_mosaic.version = 11 : i64} {
  func.func @fc_layer_kernel(%arg0: i32, %arg1: i32, %arg2: memref<8x128xf32, #tpu.memory_space<vmem>>, %arg3: memref<128x128xbf16, #tpu.memory_space<vmem>>, %arg4: memref<1x128xf32, #tpu.memory_space<vmem>>, %arg5: memref<8x128xf32, #tpu.memory_space<vmem>>, %arg6: memref<8x128xbf16, #tpu.memory_space<vmem>>) attributes {dimension_semantics = [#tpu.dimension_semantics<parallel>, #tpu.dimension_semantics<arbitrary>], iteration_bounds = array<i64: 1, 1>, scalar_prefetch = 0 : i64, scratch_operands = 1 : i64, tpu.core_type = #tpu.core_type<tc>, window_params = [{transform_indices = @transform_0, window_bounds = array<i64: 8, 128>}, {transform_indices = @transform_1, window_bounds = array<i64: 128, 128>}, {transform_indices = @transform_2, window_bounds = array<i64: 1, 128>}, {transform_indices = @transform_3, window_bounds = array<i64: 8, 128>}]} {
    %c0_i32 = arith.constant 0 : i32
    %0 = arith.cmpi eq, %arg1, %c0_i32 : i32
    %1 = arith.extui %0 : i1 to i32
    %c0_i32_0 = arith.constant 0 : i32
    %2 = arith.cmpi ne, %1, %c0_i32_0 : i32
    scf.if %2 {
      %c0_9 = arith.constant 0 : index
      %c0_10 = arith.constant 0 : index
      %12 = vector.load %arg2[%c0_9, %c0_10] : memref<8x128xf32, #tpu.memory_space<vmem>>, vector<8x128xf32>
      %13 = arith.mulf %12, %12 : vector<8x128xf32>
      %cst_11 = arith.constant dense<0.000000e+00> : vector<8xf32>
      %14 = vector.multi_reduction <add>, %13, %cst_11 [1] : vector<8x128xf32> to vector<8xf32>
      %15 = vector.shape_cast %14 : vector<8xf32> to vector<8x1xf32>
      %16 = math.rsqrt %15 : vector<8x1xf32>
      %17 = vector.broadcast %16 : vector<8x1xf32> to vector<8x128xf32>
      %18 = arith.mulf %12, %17 : vector<8x128xf32>
      %19 = arith.truncf %18 : vector<8x128xf32> to vector<8x128xbf16>
      %c0_12 = arith.constant 0 : index
      %c0_13 = arith.constant 0 : index
      %20 = vector.load %arg6[%c0_12, %c0_13] : memref<8x128xbf16, #tpu.memory_space<vmem>>, vector<8x128xbf16>
      tpu.vector_store %arg6[%c0_12, %c0_13], %19 {strides = array<i32>} : memref<8x128xbf16, #tpu.memory_space<vmem>>, vector<8x128xbf16>,
    } else {
    }
    %c0 = arith.constant 0 : index
    %c0_1 = arith.constant 0 : index
    %3 = vector.load %arg6[%c0, %c0_1] : memref<8x128xbf16, #tpu.memory_space<vmem>>, vector<8x128xbf16>
    %c0_2 = arith.constant 0 : index
    %c0_3 = arith.constant 0 : index
    %4 = vector.load %arg3[%c0_2, %c0_3] : memref<128x128xbf16, #tpu.memory_space<vmem>>, vector<128x128xbf16>
    %cst = arith.constant dense<0.000000e+00> : vector<8x128xf32>
    %5 = tpu.matmul %3, %4, %cst {dimension_numbers = #tpu.dot_dimension_numbers<[1], [0], [0], [1], [0, 0, 1, 1], [], []>} : vector<8x128xbf16>, vector<128x128xbf16>, vector<8x128xf32> -> vector<8x128xf32>
    %c0_4 = arith.constant 0 : index
    %c0_5 = arith.constant 0 : index
    %6 = vector.load %arg4[%c0_4, %c0_5] : memref<1x128xf32, #tpu.memory_space<vmem>>, vector<1x128xf32>
    %7 = vector.broadcast %6 : vector<1x128xf32> to vector<8x128xf32>
    %8 = arith.addf %5, %7 : vector<8x128xf32>
    %cst_6 = arith.constant 0.000000e+00 : f32
    %9 = vector.broadcast %cst_6 : f32 to vector<8x128xf32>
    %10 = arith.maximumf %8, %9 : vector<8x128xf32>
    %c0_7 = arith.constant 0 : index
    %c0_8 = arith.constant 0 : index
    %11 = vector.load %arg5[%c0_7, %c0_8] : memref<8x128xf32, #tpu.memory_space<vmem>>, vector<8x128xf32>
    tpu.vector_store %arg5[%c0_7, %c0_8], %10 {strides = array<i32>} : memref<8x128xf32, #tpu.memory_space<vmem>>, vector<8x128xf32>,
    return
  }
  func.func @transform_0(%arg0: i32, %arg1: i32) -> (i32, i32) {
    %c0_i32 = arith.constant 0 : i32
    %c0_i32_0 = arith.constant 0 : i32
    return %arg0, %c0_i32 : i32, i32
  }
  func.func @transform_1(%arg0: i32, %arg1: i32) -> (i32, i32) {
    %c0_i32 = arith.constant 0 : i32
    %c0_i32_0 = arith.constant 0 : i32
    return %c0_i32, %arg1 : i32, i32
  }
  func.func @transform_2(%arg0: i32, %arg1: i32) -> (i32, i32) {
    %c0_i32 = arith.constant 0 : i32
    %c0_i32_0 = arith.constant 0 : i32
    return %c0_i32, %arg1 : i32, i32
  }
  func.func @transform_3(%arg0: i32, %arg1: i32) -> (i32, i32) {
    %c0_i32 = arith.constant 0 : i32
    return %arg0, %arg1 : i32, i32
  }
}

</mosaic_0001>

<llo_original>
// kernel: fc_layer_forward.1
$region0: #{fc_layer_forward.1}
  #allocation0 [shape = 'u32[]', space=smem, size = 0x4, offset = 0x4, fixed_abs, tag = 'smem constant byte address 0x4 - core index']
  #allocation1 [shape = 'u32[144,128]{1,0:T(1,128)}', space=vmem, size = 0x12000, scoped, tag = 'internal scratch']
  #allocation2 [shape = 'bf16[8,128]{1,0:T(8,128)(2,1)}', space=vmem, size = 0x800, scoped, tag = 'scratch operand']
  %s0 = inlined_call_operand.vmem [shape: f32[8,128], index: 0, kind: input, shape index: {}]
  %s1 = inlined_call_operand.hbm [shape: bf16[128,128], index: 1, kind: input, shape index: {}]
  %s2 = inlined_call_operand.vmem [shape: f32[1,128], index: 2, kind: input, shape index: {}]
  %s3 = inlined_call_operand.hbm [shape: f32[8,128], index: 3, kind: output, shape index: {}]
  %s4 = sld [smem:[#allocation0]]
  $region30: #{fc_layer_forward.1} parent=0
    _
  %s6 = ssub.s32 1, %s4
  %s7 = scalar_select 0, %s6, %s4
  $region1: #{fc_layer_forward.1} parent=0
    #allocation3 [shape = 'u8[32768]{0}', space=vmem, size = 0x8000, scoped, tag = 'input window, operand 1, single buffered']
    #allocation4 [shape = 's32[1]{0}', space=sflag, size = 0x4, scoped, tag = 'scoped memory for fc_layer_forward.1']
    #allocation5 [shape = 's32[1]{0}', space=sflag, size = 0x4, scoped, tag = 'scoped memory for fc_layer_forward.1']
    #allocation6 [shape = 'u8[4096]{0}', space=vmem, size = 0x1000, scoped, tag = 'output window, operand 0, single buffered']
    %8 = vsyncpa [#allocation4], 0
    %9 = vsyncpa [#allocation5], 0
    // Predicated region
    $region2: #{fc_layer_forward.1} parent=1 // pred_check
      _
    $region3: #{fc_layer_forward.1} parent=1 // pred_check_branch
      %11 = sbr.rel (0) target = $region5
    $region4: #{fc_layer_forward.1} parent=1 // pred_region
      _
    $region5: #{fc_layer_forward.1} parent=1 // pred_fallthru
      _
    // Predicated region
    $region6: #{fc_layer_forward.1} parent=1 // pred_check
      _
    $region7: #{fc_layer_forward.1} parent=1 // pred_check_branch
      %13 = sbr.rel (0) target = $region9
    $region8: #{fc_layer_forward.1} parent=1 // pred_region
      %s15 = ssub.s32 1024, 1024
      %16 = vsyncadd [#allocation4], %s15
      %s17 = sshll.u32 [#allocation3], 4
      %s18 = int_to_ptr.vmem [resolvable:$true] %s17
      %23 = dma.hbm_to_vmem [thread:$0]  %s1, 1024, %s18, [#allocation4], 64, 64, 4
    $region9: #{fc_layer_forward.1} parent=1 // pred_fallthru
      _
    // Predicated region
    $region10: #{fc_layer_forward.1} parent=1 // pred_check
      _
    $region11: #{fc_layer_forward.1} parent=1 // pred_check_branch
      %25 = sbr.rel (0) target = $region13
    $region12: #{fc_layer_forward.1} parent=1 // pred_region
      _
    $region13: #{fc_layer_forward.1} parent=1 // pred_fallthru
      _
    // Predicated region
    $region14: #{fc_layer_forward.1} parent=1 // pred_check
      _
    $region15: #{fc_layer_forward.1} parent=1 // pred_check_branch
      %27 = sbr.rel (0) target = $region17
    $region16: #{fc_layer_forward.1} parent=1 // pred_region
      %28 = dma.done [#allocation4], 1024
    $region17: #{fc_layer_forward.1} parent=1 // pred_fallthru
      _
    %p30 = scmp.eq.s32.totalorder 0, 0
    // Predicated region
    $region18: #{fc_layer_forward.1} parent=1 // pred_check
      %p31 = pneg %p30
    $region19: #{fc_layer_forward.1} parent=1 // pred_check_branch
      %33 = sbr.rel (%p31) target = $region21
    $region20: #{fc_layer_forward.1} parent=1 // pred_region
      %v34 = vld [vmem:[%s0] sm:$0xff]
      %v35 = vmul.f32 %v34, %v34
      %36 = vadd.xlane.f32.xlu0 %v35
      %v37 = vpop.xlane.xlu0 %36
      %v38 = vrsqrt.pop %v37
      %v39 = vmul.f32 %v34, %v38
      %v40 = vpack.c.bf16 %v39, %v39
      %41 = vst [vmem:[#allocation2] sm:$0xf] %v40
    $region21: #{fc_layer_forward.1} parent=1 // pred_fallthru
      _
    %v42 = vld [vmem:[#allocation2] sm:$0xf]
    %v43 = vld [vmem:[#allocation3] sm:$0xf]
    %v44 = vld [vmem:[#allocation3 + $0x4] sm:$0xf]
    %v45 = vld [vmem:[#allocation3 + $0x8] sm:$0xf]
    %v46 = vld [vmem:[#allocation3 + $0xc] sm:$0xf]
    %v47 = vld [vmem:[#allocation3 + $0x10] sm:$0xf]
    %v48 = vld [vmem:[#allocation3 + $0x14] sm:$0xf]
    %v49 = vld [vmem:[#allocation3 + $0x18] sm:$0xf]
    %v50 = vld [vmem:[#allocation3 + $0x1c] sm:$0xf]
    %v51 = vld [vmem:[#allocation3 + $0x20] sm:$0xf]
    %v52 = vld [vmem:[#allocation3 + $0x24] sm:$0xf]
    %v53 = vld [vmem:[#allocation3 + $0x28] sm:$0xf]
    %v54 = vld [vmem:[#allocation3 + $0x2c] sm:$0xf]
    %v55 = vld [vmem:[#allocation3 + $0x30] sm:$0xf]
    %v56 = vld [vmem:[#allocation3 + $0x34] sm:$0xf]
    %v57 = vld [vmem:[#allocation3 + $0x38] sm:$0xf]
    %v58 = vld [vmem:[#allocation3 + $0x3c] sm:$0xf]
    %v59 = vld [vmem:[%s2] sm:$0x1]
    %v61 = vlaneseq
    %v62 = vshrl.u32 %v61, 7
    %v63 = vsub.s32 0, %v62
    %v64 = vrot.slane %v59, %v63
    %v82 = vunpack.c.l.b16 %v43
    %v83 = vunpack.c.l.b16 %v44
    %v84 = vunpack.c.l.b16 %v45
    %v85 = vunpack.c.l.b16 %v46
    %v86 = vunpack.c.l.b16 %v47
    %v87 = vunpack.c.l.b16 %v48
    %v88 = vunpack.c.l.b16 %v49
    %v89 = vunpack.c.l.b16 %v50
    %v90 = vunpack.c.l.b16 %v51
    %v91 = vunpack.c.l.b16 %v52
    %v92 = vunpack.c.l.b16 %v53
    %v93 = vunpack.c.l.b16 %v54
    %v94 = vunpack.c.l.b16 %v55
    %v95 = vunpack.c.l.b16 %v56
    %v96 = vunpack.c.l.b16 %v57
    %v97 = vunpack.c.l.b16 %v58
    %v98 = vpack.c.b16 %v83, %v82
    %v99 = vpack.c.b16 %v85, %v84
    %v100 = vpack.c.b16 %v87, %v86
    %v101 = vpack.c.b16 %v89, %v88
    %v102 = vpack.c.b16 %v91, %v90
    %v103 = vpack.c.b16 %v93, %v92
    %v104 = vpack.c.b16 %v95, %v94
    %v105 = vpack.c.b16 %v97, %v96
    %114 = vmatprep.subr.bf16.mxu0 0
    %115 = vmatpush1.bf16.msra.mxu0 %v98
    %116 = vmatprep.subr.bf16.mxu0 0
    %117 = vmatpush1.bf16.msra.mxu0 %v99
    %118 = vmatprep.subr.bf16.mxu0 0
    %119 = vmatpush1.bf16.msra.mxu0 %v100
    %120 = vmatprep.subr.bf16.mxu0 0
    %121 = vmatpush1.bf16.msra.mxu0 %v101
    %122 = vmatprep.subr.bf16.mxu0 0
    %123 = vmatpush1.bf16.msra.mxu0 %v102
    %124 = vmatprep.subr.bf16.mxu0 0
    %125 = vmatpush1.bf16.msra.mxu0 %v103
    %126 = vmatprep.subr.bf16.mxu0 0
    %127 = vmatpush1.bf16.msra.mxu0 %v104
    %128 = vmatprep.subr.bf16.mxu0 0
    %129 = vmatpush1.bf16.msra.mxu0 %v105
    %130 = vmatprep.subr.bf16.mxu0 0
    %131 = vmatpush1.bf16.msra.mxu0 0
    %132 = vmatprep.subr.bf16.mxu0 0
    %133 = vmatpush1.bf16.msra.mxu0 0
    %134 = vmatprep.subr.bf16.mxu0 0
    %135 = vmatpush1.bf16.msra.mxu0 0
    %136 = vmatprep.subr.bf16.mxu0 0
    %137 = vmatpush1.bf16.msra.mxu0 0
    %138 = vmatprep.subr.bf16.mxu0 0
    %139 = vmatpush1.bf16.msra.mxu0 0
    %140 = vmatprep.subr.bf16.mxu0 0
    %141 = vmatpush1.bf16.msra.mxu0 0
    %142 = vmatprep.subr.bf16.mxu0 0
    %143 = vmatpush1.bf16.msra.mxu0 0
    %144 = vmatprep.subr.bf16.mxu0 0
    %145 = vmatpush1.bf16.msra.mxu0 0
    %146 = vmatprep.mubr.bf16.mxu0 0
    %147 = vmatmul.mubr.bf16.gmra.mrb[0].mxu0 %v42
    %v148 = vpop.f32.mrb[0].mxu0
    %v149 = vadd.f32 %v64, %v148
    %v150 = vpop.f32.mrb[0].mxu0
    %v151 = vpop.f32.mrb[0].mxu0
    %v152 = vpop.f32.mrb[0].mxu0
    %153 = vdwg.mxu0
    %v154 = vmax.f32 %v149, 0.0
    %155 = vst [vmem:[#allocation6] sm:$0xff] %v154
    // Predicated region
    $region22: #{fc_layer_forward.1} parent=1 // pred_check
      _
    $region23: #{fc_layer_forward.1} parent=1 // pred_check_branch
      %157 = sbr.rel (0) target = $region25
    $region24: #{fc_layer_forward.1} parent=1 // pred_region
      %s159 = ssub.s32 128, 128
      %160 = vsyncadd [#allocation5], %s159
      %s162 = sshll.u32 [#allocation6], 4
      %s163 = int_to_ptr.vmem [resolvable:$true] %s162
      %165 = dma.vmem_to_hbm [thread:$0]  %s163, 128, %s3, [#allocation5]
    $region25: #{fc_layer_forward.1} parent=1 // pred_fallthru
      _
    // Predicated region
    $region26: #{fc_layer_forward.1} parent=1 // pred_check
      _
    $region27: #{fc_layer_forward.1} parent=1 // pred_check_branch
      %167 = sbr.rel (0) target = $region29
    $region28: #{fc_layer_forward.1} parent=1 // pred_region
      %168 = dma.done [#allocation5], 128
    $region29: #{fc_layer_forward.1} parent=1 // pred_fallthru
      _
    %169 = vsyncpa [#allocation4], 1
    %170 = vsyncpa [#allocation5], 1

</llo_original>
